<compile_context>
chip_gen: v5e
topology: v5e:2x2
jax: 0.10.0
libtpu: 0.0.40
codegen_flags: <defaults>
</compile_context>

<pallas_src>
import jax
import jax.numpy as jnp
from jax.experimental import pallas as pl
from jax.experimental.pallas import tpu as pltpu

HID = 8  # hidden width of the synthetic pointwise "lab_model" (1 -> HID -> 2)

_EPS = 1e-8
_LAB_THR = 0.008856        # rgb_to_lab threshold on normalized XYZ
_LAB_INV_THR = 0.2068966   # lab_to_rgb threshold on f-values (= cbrt(0.008856))

# Reciprocal / shared constants (used identically by kernel and reference).
_INV_1_055 = 1.0 / 1.055
_INV_12_92 = 1.0 / 12.92
_INV_116 = 1.0 / 116.0
_INV_500 = 1.0 / 500.0
_INV_200 = 1.0 / 200.0
_INV_7_787 = 1.0 / 7.787
_INV_50 = 1.0 / 50.0
_INV_2_4 = 1.0 / 2.4
_FOUR_29 = 4.0 / 29.0

_LANE_TILE = 512      # lanes per block (multiple of 128)
_ROW_TILE_CAP = 512   # sublane rows per block cap


def _cbrt(t):
    # t is pre-clamped to > 0 before log.
    return jnp.exp(jnp.log(jnp.maximum(t, _EPS)) * (1.0 / 3.0))


def _powf(t, p):
    return jnp.exp(jnp.log(jnp.maximum(t, _EPS)) * p)


def _round_up(x, m):
    return ((x + m - 1) // m) * m


def _lab_wrapper_kernel(w1_ref, b1_ref, w2_ref, b2_ref, rgb_ref, out_ref):
    # rgb_ref / out_ref tiles: (1, 3, TR, LANES) float32
    r = rgb_ref[0, 0]
    g = rgb_ref[0, 1]
    b = rgb_ref[0, 2]

    # ---- sRGB -> linear RGB ----
    def srgb_to_linear(c):
        return jnp.where(c > 0.04045, _powf((c + 0.055) * _INV_1_055, 2.4),
                         c * _INV_12_92)

    rl = srgb_to_linear(r)
    gl = srgb_to_linear(g)
    bl = srgb_to_linear(b)

    # ---- linear RGB -> Y (D65); only L of LAB is consumed downstream ----
    y = 0.212671 * rl + 0.715160 * gl + 0.072169 * bl
    fy = jnp.where(y > _LAB_THR, _cbrt(jnp.maximum(y, _LAB_THR)),
                   7.787 * y + _FOUR_29)
    L = 116.0 * fy - 16.0

    # ---- inner model on normalized L: pointwise MLP 1 -> HID -> 2, tanh ----
    l_norm = L * _INV_50 - 1.0

    # Hoist SMEM scalar reads out of the unrolled loop.
    w1s = [w1_ref[k] for k in range(HID)]
    b1s = [b1_ref[k] for k in range(HID)]
    w2a = [w2_ref[k, 0] for k in range(HID)]
    w2b = [w2_ref[k, 1] for k in range(HID)]

    h0 = jnp.tanh(l_norm * w1s[0] + b1s[0])
    a_acc = h0 * w2a[0]
    b_acc = h0 * w2b[0]
    for k in range(1, HID):  # static unroll; HID is tiny, pure VPU/EUP work
        hk = jnp.tanh(l_norm * w1s[k] + b1s[k])
        a_acc = a_acc + hk * w2a[k]
        b_acc = b_acc + hk * w2b[k]
    ab_a = jnp.tanh(a_acc + b2_ref[0]) * 110.0  # de-normalize ab
    ab_b = jnp.tanh(b_acc + b2_ref[1]) * 110.0

    # ---- LAB = [L, ab_a, ab_b] -> linear RGB ----
    fy2 = (L + 16.0) * _INV_116
    fx2 = ab_a * _INV_500 + fy2
    fz2 = jnp.maximum(fy2 - ab_b * _INV_200, 0.0)

    def f_inv(t):
        return jnp.where(t > _LAB_INV_THR, t * t * t, (t - _FOUR_29) * _INV_7_787)

    X = f_inv(fx2) * 0.95047
    Y = f_inv(fy2)
    Z = f_inv(fz2) * 1.08883

    rr = 3.2404813432005266 * X - 1.5371515162713185 * Y - 0.4985363261688878 * Z
    gg = -0.9692549499965682 * X + 1.8759900014898907 * Y + 0.0415559265582928 * Z
    bb = 0.0556466391351772 * X - 0.2040413383665112 * Y + 1.0573110696453443 * Z

    # kornia lab_to_rgb clamps the linear RGB before gamma
    rr = jnp.clip(rr, 0.0, 1.0)
    gg = jnp.clip(gg, 0.0, 1.0)
    bb = jnp.clip(bb, 0.0, 1.0)

    # ---- linear RGB -> sRGB ----
    def linear_to_srgb(c):
        return jnp.where(c > 0.0031308, 1.055 * _powf(c, _INV_2_4) - 0.055,
                         12.92 * c)

    # final .clamp(min=0, max=1.0) from LabWrapper
    out_ref[0, 0] = jnp.clip(linear_to_srgb(rr), 0.0, 1.0)
    out_ref[0, 1] = jnp.clip(linear_to_srgb(gg), 0.0, 1.0)
    out_ref[0, 2] = jnp.clip(linear_to_srgb(bb), 0.0, 1.0)


@jax.jit
def lab_wrapper_forward(rgb_nchw, w1, b1, w2, b2):
    B, C, H, W = rgb_nchw.shape
    assert C == 3, "expected RGB input with 3 channels"
    P = H * W

    # ---- lane-dense tiling of the flattened pixel axis (no transposes) ----
    LANES = _LANE_TILE if P >= _LANE_TILE else _round_up(P, 128)
    R = _round_up(P, LANES) // LANES          # rows of LANES pixels per image
    if R <= _ROW_TILE_CAP:
        TR = R                                # full-dim row block (any size ok)
        if B == 1 and R >= 16:
            # Keep >= 2 grid steps so both v7x TensorCores get work.
            TR = max(8, (((R + 1) // 2) // 8) * 8)
    else:
        TR = _ROW_TILE_CAP                    # multiple of 8
    R_pad = _round_up(R, TR)
    P_pad = R_pad * LANES

    flat = rgb_nchw.astype(jnp.float32).reshape(B, 3, P)   # free reshape (NCHW kept)
    if P_pad != P:
        flat = jnp.pad(flat, ((0, 0), (0, 0), (0, P_pad - P)))
    planes = flat.reshape(B, 3, R_pad, LANES)               # free reshape

    grid = (B, R_pad // TR)
    smem_spec = pl.BlockSpec(memory_space=pltpu.MemorySpace.SMEM)
    img_spec = pl.BlockSpec((1, 3, TR, LANES), lambda b, i: (b, 0, i, 0))

    out_planes = pl.pallas_call(
        _lab_wrapper_kernel,
        out_shape=jax.ShapeDtypeStruct((B, 3, R_pad, LANES), jnp.float32),
        grid=grid,
        in_specs=[
            smem_spec,  # w1 (HID,)
            smem_spec,  # b1 (HID,)
            smem_spec,  # w2 (HID, 2)
            smem_spec,  # b2 (2,)
            img_spec,   # rgb planes (B, 3, R_pad, LANES)
        ],
        out_specs=pl.BlockSpec((1, 3, TR, LANES), lambda b, i: (b, 0, i, 0)),
        compiler_params=pltpu.CompilerParams(
            dimension_semantics=("parallel", "parallel"),
            vmem_limit_bytes=32 * 1024 * 1024,
        ),
    )(w1, b1, w2, b2, planes)

    out_flat = out_planes.reshape(B, 3, P_pad)
    if P_pad != P:
        out_flat = out_flat[:, :, :P]
    return out_flat.reshape(B, 3, H, W)


# ---------------- pure-JAX reference (for a sanity check) ----------------
def _ref_forward(rgb, w1, b1, w2, b2):
    rgb = rgb.astype(jnp.float32)
    lin = jnp.where(rgb > 0.04045, ((rgb + 0.055) * _INV_1_055) ** 2.4,
                    rgb * _INV_12_92)
    r, g, b = lin[:, 0], lin[:, 1], lin[:, 2]
    y = 0.212671 * r + 0.715160 * g + 0.072169 * b
    fy = jnp.where(y > _LAB_THR, jnp.maximum(y, _LAB_THR) ** (1.0 / 3.0),
                   7.787 * y + _FOUR_29)
    L = 116.0 * fy - 16.0
    l_norm = L * _INV_50 - 1.0
    h = jnp.tanh(l_norm[..., None] * w1 + b1)          # (B,H,W,HID)
    ab = jnp.tanh(h @ w2 + b2) * 110.0                 # (B,H,W,2)
    a_lab, b_lab = ab[..., 0], ab[..., 1]
    fy2 = (L + 16.0) * _INV_116
    fx2 = a_lab * _INV_500 + fy2
    fz2 = jnp.maximum(fy2 - b_lab * _INV_200, 0.0)
    f_inv = lambda t: jnp.where(t > _LAB_INV_THR, t ** 3, (t - _FOUR_29) * _INV_7_787)
    X, Y, Z = f_inv(fx2) * 0.95047, f_inv(fy2), f_inv(fz2) * 1.08883
    rr = 3.2404813432005266 * X - 1.5371515162713185 * Y - 0.4985363261688878 * Z
    gg = -0.9692549499965682 * X + 1.8759900014898907 * Y + 0.0415559265582928 * Z
    bb = 0.0556466391351772 * X - 0.2040413383665112 * Y + 1.0573110696453443 * Z
    lin_out = jnp.clip(jnp.stack([rr, gg, bb], axis=1), 0.0, 1.0)
    srgb = jnp.where(lin_out > 0.0031308,
                     1.055 * jnp.maximum(lin_out, _EPS) ** _INV_2_4 - 0.055,
                     12.92 * lin_out)
    return jnp.clip(srgb, 0.0, 1.0)


if __name__ == "__main__":
    key = jax.random.PRNGKey(0)
    k_x, k_w1, k_b1, k_w2, k_b2 = jax.random.split(key, 5)

    B, C, H, W = 2, 3, 16, 16  # NCHW RGB input
    rgb = jax.random.uniform(k_x, (B, C, H, W), dtype=jnp.float32)

    # Deterministic synthetic "lab_model" parameters (pointwise 1 -> HID -> 2 MLP)
    w1 = jax.random.normal(k_w1, (HID,), dtype=jnp.float32) * 0.5
    b1 = jax.random.normal(k_b1, (HID,), dtype=jnp.float32) * 0.1
    w2 = jax.random.normal(k_w2, (HID, 2), dtype=jnp.float32) * 0.5
    b2 = jax.random.normal(k_b2, (2,), dtype=jnp.float32) * 0.1

    out = lab_wrapper_forward(rgb, w1, b1, w2, b2)
    out = jax.block_until_ready(out)

    ref = _ref_forward(rgb, w1, b1, w2, b2)
    assert out.shape == (B, 3, H, W)
    assert jnp.max(jnp.abs(out - ref)) < 2e-4, float(jnp.max(jnp.abs(out - ref)))

    print("KERNEL_OK")
</pallas_src>

<mosaic_0001>
module attributes {stable_mosaic.version = 11 : i64} {
  func.func @_lab_wrapper_kernel(%arg0: i32, %arg1: i32, %arg2: memref<8xf32, #tpu.memory_space<smem>>, %arg3: memref<8xf32, #tpu.memory_space<smem>>, %arg4: memref<8x2xf32, #tpu.memory_space<smem>>, %arg5: memref<2xf32, #tpu.memory_space<smem>>, %arg6: memref<1x3x1x256xf32, #tpu.memory_space<vmem>>, %arg7: memref<1x3x1x256xf32, #tpu.memory_space<vmem>>) attributes {dimension_semantics = [#tpu.dimension_semantics<parallel>, #tpu.dimension_semantics<parallel>], iteration_bounds = array<i64: 2, 1>, scalar_prefetch = 0 : i64, scratch_operands = 0 : i64, tpu.core_type = #tpu.core_type<tc>, window_params = [{transform_indices = @transform_0, window_bounds = array<i64: 8>}, {transform_indices = @transform_1, window_bounds = array<i64: 8>}, {transform_indices = @transform_2, window_bounds = array<i64: 8, 2>}, {transform_indices = @transform_3, window_bounds = array<i64: 2>}, {transform_indices = @transform_4, window_bounds = array<i64: 1, 3, 1, 256>}, {transform_indices = @transform_5, window_bounds = array<i64: 1, 3, 1, 256>}]} {
    %c0 = arith.constant 0 : index
    %c0_0 = arith.constant 0 : index
    %c0_1 = arith.constant 0 : index
    %c0_2 = arith.constant 0 : index
    %0 = vector.load %arg6[%c0, %c0_0, %c0_1, %c0_2] : memref<1x3x1x256xf32, #tpu.memory_space<vmem>>, vector<1x1x1x256xf32>
    %1 = vector.shape_cast %0 : vector<1x1x1x256xf32> to vector<1x256xf32>
    %c0_3 = arith.constant 0 : index
    %c1 = arith.constant 1 : index
    %c0_4 = arith.constant 0 : index
    %c0_5 = arith.constant 0 : index
    %2 = vector.load %arg6[%c0_3, %c1, %c0_4, %c0_5] : memref<1x3x1x256xf32, #tpu.memory_space<vmem>>, vector<1x1x1x256xf32>
    %3 = vector.shape_cast %2 : vector<1x1x1x256xf32> to vector<1x256xf32>
    %c0_6 = arith.constant 0 : index
    %c2 = arith.constant 2 : index
    %c0_7 = arith.constant 0 : index
    %c0_8 = arith.constant 0 : index
    %4 = vector.load %arg6[%c0_6, %c2, %c0_7, %c0_8] : memref<1x3x1x256xf32, #tpu.memory_space<vmem>>, vector<1x1x1x256xf32>
    %5 = vector.shape_cast %4 : vector<1x1x1x256xf32> to vector<1x256xf32>
    %cst = arith.constant 4.045000e-02 : f32
    %6 = vector.broadcast %cst : f32 to vector<1x256xf32>
    %7 = arith.cmpf ogt, %1, %6 : vector<1x256xf32>
    %cst_9 = arith.constant 5.500000e-02 : f32
    %8 = vector.broadcast %cst_9 : f32 to vector<1x256xf32>
    %9 = arith.addf %1, %8 : vector<1x256xf32>
    %cst_10 = arith.constant 0.947867274 : f32
    %10 = vector.broadcast %cst_10 : f32 to vector<1x256xf32>
    %11 = arith.mulf %9, %10 : vector<1x256xf32>
    %cst_11 = arith.constant 9.99999993E-9 : f32
    %12 = vector.broadcast %cst_11 : f32 to vector<1x256xf32>
    %13 = arith.maximumf %11, %12 : vector<1x256xf32>
    %14 = math.log %13 : vector<1x256xf32>
    %cst_12 = arith.constant 2.400000e+00 : f32
    %15 = vector.broadcast %cst_12 : f32 to vector<1x256xf32>
    %16 = arith.mulf %14, %15 : vector<1x256xf32>
    %17 = math.exp %16 : vector<1x256xf32>
    %cst_13 = arith.constant 0.0773993805 : f32
    %18 = vector.broadcast %cst_13 : f32 to vector<1x256xf32>
    %19 = arith.mulf %1, %18 : vector<1x256xf32>
    %20 = arith.select %7, %17, %19 : vector<1x256xi1>, vector<1x256xf32>
    %cst_14 = arith.constant 4.045000e-02 : f32
    %21 = vector.broadcast %cst_14 : f32 to vector<1x256xf32>
    %22 = arith.cmpf ogt, %3, %21 : vector<1x256xf32>
    %cst_15 = arith.constant 5.500000e-02 : f32
    %23 = vector.broadcast %cst_15 : f32 to vector<1x256xf32>
    %24 = arith.addf %3, %23 : vector<1x256xf32>
    %cst_16 = arith.constant 0.947867274 : f32
    %25 = vector.broadcast %cst_16 : f32 to vector<1x256xf32>
    %26 = arith.mulf %24, %25 : vector<1x256xf32>
    %cst_17 = arith.constant 9.99999993E-9 : f32
    %27 = vector.broadcast %cst_17 : f32 to vector<1x256xf32>
    %28 = arith.maximumf %26, %27 : vector<1x256xf32>
    %29 = math.log %28 : vector<1x256xf32>
    %cst_18 = arith.constant 2.400000e+00 : f32
    %30 = vector.broadcast %cst_18 : f32 to vector<1x256xf32>
    %31 = arith.mulf %29, %30 : vector<1x256xf32>
    %32 = math.exp %31 : vector<1x256xf32>
    %cst_19 = arith.constant 0.0773993805 : f32
    %33 = vector.broadcast %cst_19 : f32 to vector<1x256xf32>
    %34 = arith.mulf %3, %33 : vector<1x256xf32>
    %35 = arith.select %22, %32, %34 : vector<1x256xi1>, vector<1x256xf32>
    %cst_20 = arith.constant 4.045000e-02 : f32
    %36 = vector.broadcast %cst_20 : f32 to vector<1x256xf32>
    %37 = arith.cmpf ogt, %5, %36 : vector<1x256xf32>
    %cst_21 = arith.constant 5.500000e-02 : f32
    %38 = vector.broadcast %cst_21 : f32 to vector<1x256xf32>
    %39 = arith.addf %5, %38 : vector<1x256xf32>
    %cst_22 = arith.constant 0.947867274 : f32
    %40 = vector.broadcast %cst_22 : f32 to vector<1x256xf32>
    %41 = arith.mulf %39, %40 : vector<1x256xf32>
    %cst_23 = arith.constant 9.99999993E-9 : f32
    %42 = vector.broadcast %cst_23 : f32 to vector<1x256xf32>
    %43 = arith.maximumf %41, %42 : vector<1x256xf32>
    %44 = math.log %43 : vector<1x256xf32>
    %cst_24 = arith.constant 2.400000e+00 : f32
    %45 = vector.broadcast %cst_24 : f32 to vector<1x256xf32>
    %46 = arith.mulf %44, %45 : vector<1x256xf32>
    %47 = math.exp %46 : vector<1x256xf32>
    %cst_25 = arith.constant 0.0773993805 : f32
    %48 = vector.broadcast %cst_25 : f32 to vector<1x256xf32>
    %49 = arith.mulf %5, %48 : vector<1x256xf32>
    %50 = arith.select %37, %47, %49 : vector<1x256xi1>, vector<1x256xf32>
    %cst_26 = arith.constant 2.126710e-01 : f32
    %51 = vector.broadcast %cst_26 : f32 to vector<1x256xf32>
    %52 = arith.mulf %51, %20 : vector<1x256xf32>
    %cst_27 = arith.constant 7.151600e-01 : f32
    %53 = vector.broadcast %cst_27 : f32 to vector<1x256xf32>
    %54 = arith.mulf %53, %35 : vector<1x256xf32>
    %55 = arith.addf %52, %54 : vector<1x256xf32>
    %cst_28 = arith.constant 7.216900e-02 : f32
    %56 = vector.broadcast %cst_28 : f32 to vector<1x256xf32>
    %57 = arith.mulf %56, %50 : vector<1x256xf32>
    %58 = arith.addf %55, %57 : vector<1x256xf32>
    %cst_29 = arith.constant 8.856000e-03 : f32
    %59 = vector.broadcast %cst_29 : f32 to vector<1x256xf32>
    %60 = arith.cmpf ogt, %58, %59 : vector<1x256xf32>
    %cst_30 = arith.constant 8.856000e-03 : f32
    %61 = vector.broadcast %cst_30 : f32 to vector<1x256xf32>
    %62 = arith.maximumf %58, %61 : vector<1x256xf32>
    %cst_31 = arith.constant 9.99999993E-9 : f32
    %63 = vector.broadcast %cst_31 : f32 to vector<1x256xf32>
    %64 = arith.maximumf %62, %63 : vector<1x256xf32>
    %65 = math.log %64 : vector<1x256xf32>
    %cst_32 = arith.constant 0.333333343 : f32
    %66 = vector.broadcast %cst_32 : f32 to vector<1x256xf32>
    %67 = arith.mulf %65, %66 : vector<1x256xf32>
    %68 = math.exp %67 : vector<1x256xf32>
    %cst_33 = arith.constant 7.787000e+00 : f32
    %69 = vector.broadcast %cst_33 : f32 to vector<1x256xf32>
    %70 = arith.mulf %69, %58 : vector<1x256xf32>
    %cst_34 = arith.constant 0.137931034 : f32
    %71 = vector.broadcast %cst_34 : f32 to vector<1x256xf32>
    %72 = arith.addf %70, %71 : vector<1x256xf32>
    %73 = arith.select %60, %68, %72 : vector<1x256xi1>, vector<1x256xf32>
    %cst_35 = arith.constant 1.160000e+02 : f32
    %74 = vector.broadcast %cst_35 : f32 to vector<1x256xf32>
    %75 = arith.mulf %74, %73 : vector<1x256xf32>
    %cst_36 = arith.constant 1.600000e+01 : f32
    %76 = vector.broadcast %cst_36 : f32 to vector<1x256xf32>
    %77 = arith.subf %75, %76 : vector<1x256xf32>
    %cst_37 = arith.constant 2.000000e-02 : f32
    %78 = vector.broadcast %cst_37 : f32 to vector<1x256xf32>
    %79 = arith.mulf %77, %78 : vector<1x256xf32>
    %cst_38 = arith.constant 1.000000e+00 : f32
    %80 = vector.broadcast %cst_38 : f32 to vector<1x256xf32>
    %81 = arith.subf %79, %80 : vector<1x256xf32>
    %c0_39 = arith.constant 0 : index
    %82 = memref.load %arg2[%c0_39] : memref<8xf32, #tpu.memory_space<smem>>
    %c1_40 = arith.constant 1 : index
    %83 = memref.load %arg2[%c1_40] : memref<8xf32, #tpu.memory_space<smem>>
    %c2_41 = arith.constant 2 : index
    %84 = memref.load %arg2[%c2_41] : memref<8xf32, #tpu.memory_space<smem>>
    %c3 = arith.constant 3 : index
    %85 = memref.load %arg2[%c3] : memref<8xf32, #tpu.memory_space<smem>>
    %c4 = arith.constant 4 : index
    %86 = memref.load %arg2[%c4] : memref<8xf32, #tpu.memory_space<smem>>
    %c5 = arith.constant 5 : index
    %87 = memref.load %arg2[%c5] : memref<8xf32, #tpu.memory_space<smem>>
    %c6 = arith.constant 6 : index
    %88 = memref.load %arg2[%c6] : memref<8xf32, #tpu.memory_space<smem>>
    %c7 = arith.constant 7 : index
    %89 = memref.load %arg2[%c7] : memref<8xf32, #tpu.memory_space<smem>>
    %c0_42 = arith.constant 0 : index
    %90 = memref.load %arg3[%c0_42] : memref<8xf32, #tpu.memory_space<smem>>
    %c1_43 = arith.constant 1 : index
    %91 = memref.load %arg3[%c1_43] : memref<8xf32, #tpu.memory_space<smem>>
    %c2_44 = arith.constant 2 : index
    %92 = memref.load %arg3[%c2_44] : memref<8xf32, #tpu.memory_space<smem>>
    %c3_45 = arith.constant 3 : index
    %93 = memref.load %arg3[%c3_45] : memref<8xf32, #tpu.memory_space<smem>>
    %c4_46 = arith.constant 4 : index
    %94 = memref.load %arg3[%c4_46] : memref<8xf32, #tpu.memory_space<smem>>
    %c5_47 = arith.constant 5 : index
    %95 = memref.load %arg3[%c5_47] : memref<8xf32, #tpu.memory_space<smem>>
    %c6_48 = arith.constant 6 : index
    %96 = memref.load %arg3[%c6_48] : memref<8xf32, #tpu.memory_space<smem>>
    %c7_49 = arith.constant 7 : index
    %97 = memref.load %arg3[%c7_49] : memref<8xf32, #tpu.memory_space<smem>>
    %c0_50 = arith.constant 0 : index
    %c0_51 = arith.constant 0 : index
    %98 = memref.load %arg4[%c0_50, %c0_51] : memref<8x2xf32, #tpu.memory_space<smem>>
    %c1_52 = arith.constant 1 : index
    %c0_53 = arith.constant 0 : index
    %99 = memref.load %arg4[%c1_52, %c0_53] : memref<8x2xf32, #tpu.memory_space<smem>>
    %c2_54 = arith.constant 2 : index
    %c0_55 = arith.constant 0 : index
    %100 = memref.load %arg4[%c2_54, %c0_55] : memref<8x2xf32, #tpu.memory_space<smem>>
    %c3_56 = arith.constant 3 : index
    %c0_57 = arith.constant 0 : index
    %101 = memref.load %arg4[%c3_56, %c0_57] : memref<8x2xf32, #tpu.memory_space<smem>>
    %c4_58 = arith.constant 4 : index
    %c0_59 = arith.constant 0 : index
    %102 = memref.load %arg4[%c4_58, %c0_59] : memref<8x2xf32, #tpu.memory_space<smem>>
    %c5_60 = arith.constant 5 : index
    %c0_61 = arith.constant 0 : index
    %103 = memref.load %arg4[%c5_60, %c0_61] : memref<8x2xf32, #tpu.memory_space<smem>>
    %c6_62 = arith.constant 6 : index
    %c0_63 = arith.constant 0 : index
    %104 = memref.load %arg4[%c6_62, %c0_63] : memref<8x2xf32, #tpu.memory_space<smem>>
    %c7_64 = arith.constant 7 : index
    %c0_65 = arith.constant 0 : index
    %105 = memref.load %arg4[%c7_64, %c0_65] : memref<8x2xf32, #tpu.memory_space<smem>>
    %c0_66 = arith.constant 0 : index
    %c1_67 = arith.constant 1 : index
    %106 = memref.load %arg4[%c0_66, %c1_67] : memref<8x2xf32, #tpu.memory_space<smem>>
    %c1_68 = arith.constant 1 : index
    %c1_69 = arith.constant 1 : index
    %107 = memref.load %arg4[%c1_68, %c1_69] : memref<8x2xf32, #tpu.memory_space<smem>>
    %c2_70 = arith.constant 2 : index
    %c1_71 = arith.constant 1 : index
    %108 = memref.load %arg4[%c2_70, %c1_71] : memref<8x2xf32, #tpu.memory_space<smem>>
    %c3_72 = arith.constant 3 : index
    %c1_73 = arith.constant 1 : index
    %109 = memref.load %arg4[%c3_72, %c1_73] : memref<8x2xf32, #tpu.memory_space<smem>>
    %c4_74 = arith.constant 4 : index
    %c1_75 = arith.constant 1 : index
    %110 = memref.load %arg4[%c4_74, %c1_75] : memref<8x2xf32, #tpu.memory_space<smem>>
    %c5_76 = arith.constant 5 : index
    %c1_77 = arith.constant 1 : index
    %111 = memref.load %arg4[%c5_76, %c1_77] : memref<8x2xf32, #tpu.memory_space<smem>>
    %c6_78 = arith.constant 6 : index
    %c1_79 = arith.constant 1 : index
    %112 = memref.load %arg4[%c6_78, %c1_79] : memref<8x2xf32, #tpu.memory_space<smem>>
    %c7_80 = arith.constant 7 : index
    %c1_81 = arith.constant 1 : index
    %113 = memref.load %arg4[%c7_80, %c1_81] : memref<8x2xf32, #tpu.memory_space<smem>>
    %114 = vector.broadcast %82 : f32 to vector<1x256xf32>
    %115 = arith.mulf %81, %114 : vector<1x256xf32>
    %116 = vector.broadcast %90 : f32 to vector<1x256xf32>
    %117 = arith.addf %115, %116 : vector<1x256xf32>
    %118 = math.tanh %117 : vector<1x256xf32>
    %119 = vector.broadcast %98 : f32 to vector<1x256xf32>
    %120 = arith.mulf %118, %119 : vector<1x256xf32>
    %121 = vector.broadcast %106 : f32 to vector<1x256xf32>
    %122 = arith.mulf %118, %121 : vector<1x256xf32>
    %123 = vector.broadcast %83 : f32 to vector<1x256xf32>
    %124 = arith.mulf %81, %123 : vector<1x256xf32>
    %125 = vector.broadcast %91 : f32 to vector<1x256xf32>
    %126 = arith.addf %124, %125 : vector<1x256xf32>
    %127 = math.tanh %126 : vector<1x256xf32>
    %128 = vector.broadcast %99 : f32 to vector<1x256xf32>
    %129 = arith.mulf %127, %128 : vector<1x256xf32>
    %130 = arith.addf %120, %129 : vector<1x256xf32>
    %131 = vector.broadcast %107 : f32 to vector<1x256xf32>
    %132 = arith.mulf %127, %131 : vector<1x256xf32>
    %133 = arith.addf %122, %132 : vector<1x256xf32>
    %134 = vector.broadcast %84 : f32 to vector<1x256xf32>
    %135 = arith.mulf %81, %134 : vector<1x256xf32>
    %136 = vector.broadcast %92 : f32 to vector<1x256xf32>
    %137 = arith.addf %135, %136 : vector<1x256xf32>
    %138 = math.tanh %137 : vector<1x256xf32>
    %139 = vector.broadcast %100 : f32 to vector<1x256xf32>
    %140 = arith.mulf %138, %139 : vector<1x256xf32>
    %141 = arith.addf %130, %140 : vector<1x256xf32>
    %142 = vector.broadcast %108 : f32 to vector<1x256xf32>
    %143 = arith.mulf %138, %142 : vector<1x256xf32>
    %144 = arith.addf %133, %143 : vector<1x256xf32>
    %145 = vector.broadcast %85 : f32 to vector<1x256xf32>
    %146 = arith.mulf %81, %145 : vector<1x256xf32>
    %147 = vector.broadcast %93 : f32 to vector<1x256xf32>
    %148 = arith.addf %146, %147 : vector<1x256xf32>
    %149 = math.tanh %148 : vector<1x256xf32>
    %150 = vector.broadcast %101 : f32 to vector<1x256xf32>
    %151 = arith.mulf %149, %150 : vector<1x256xf32>
    %152 = arith.addf %141, %151 : vector<1x256xf32>
    %153 = vector.broadcast %109 : f32 to vector<1x256xf32>
    %154 = arith.mulf %149, %153 : vector<1x256xf32>
    %155 = arith.addf %144, %154 : vector<1x256xf32>
    %156 = vector.broadcast %86 : f32 to vector<1x256xf32>
    %157 = arith.mulf %81, %156 : vector<1x256xf32>
    %158 = vector.broadcast %94 : f32 to vector<1x256xf32>
    %159 = arith.addf %157, %158 : vector<1x256xf32>
    %160 = math.tanh %159 : vector<1x256xf32>
    %161 = vector.broadcast %102 : f32 to vector<1x256xf32>
    %162 = arith.mulf %160, %161 : vector<1x256xf32>
    %163 = arith.addf %152, %162 : vector<1x256xf32>
    %164 = vector.broadcast %110 : f32 to vector<1x256xf32>
    %165 = arith.mulf %160, %164 : vector<1x256xf32>
    %166 = arith.addf %155, %165 : vector<1x256xf32>
    %167 = vector.broadcast %87 : f32 to vector<1x256xf32>
    %168 = arith.mulf %81, %167 : vector<1x256xf32>
    %169 = vector.broadcast %95 : f32 to vector<1x256xf32>
    %170 = arith.addf %168, %169 : vector<1x256xf32>
    %171 = math.tanh %170 : vector<1x256xf32>
    %172 = vector.broadcast %103 : f32 to vector<1x256xf32>
    %173 = arith.mulf %171, %172 : vector<1x256xf32>
    %174 = arith.addf %163, %173 : vector<1x256xf32>
    %175 = vector.broadcast %111 : f32 to vector<1x256xf32>
    %176 = arith.mulf %171, %175 : vector<1x256xf32>
    %177 = arith.addf %166, %176 : vector<1x256xf32>
    %178 = vector.broadcast %88 : f32 to vector<1x256xf32>
    %179 = arith.mulf %81, %178 : vector<1x256xf32>
    %180 = vector.broadcast %96 : f32 to vector<1x256xf32>
    %181 = arith.addf %179, %180 : vector<1x256xf32>
    %182 = math.tanh %181 : vector<1x256xf32>
    %183 = vector.broadcast %104 : f32 to vector<1x256xf32>
    %184 = arith.mulf %182, %183 : vector<1x256xf32>
    %185 = arith.addf %174, %184 : vector<1x256xf32>
    %186 = vector.broadcast %112 : f32 to vector<1x256xf32>
    %187 = arith.mulf %182, %186 : vector<1x256xf32>
    %188 = arith.addf %177, %187 : vector<1x256xf32>
    %189 = vector.broadcast %89 : f32 to vector<1x256xf32>
    %190 = arith.mulf %81, %189 : vector<1x256xf32>
    %191 = vector.broadcast %97 : f32 to vector<1x256xf32>
    %192 = arith.addf %190, %191 : vector<1x256xf32>
    %193 = math.tanh %192 : vector<1x256xf32>
    %194 = vector.broadcast %105 : f32 to vector<1x256xf32>
    %195 = arith.mulf %193, %194 : vector<1x256xf32>
    %196 = arith.addf %185, %195 : vector<1x256xf32>
    %197 = vector.broadcast %113 : f32 to vector<1x256xf32>
    %198 = arith.mulf %193, %197 : vector<1x256xf32>
    %199 = arith.addf %188, %198 : vector<1x256xf32>
    %c0_82 = arith.constant 0 : index
    %200 = memref.load %arg5[%c0_82] : memref<2xf32, #tpu.memory_space<smem>>
    %201 = vector.broadcast %200 : f32 to vector<1x256xf32>
    %202 = arith.addf %196, %201 : vector<1x256xf32>
    %203 = math.tanh %202 : vector<1x256xf32>
    %cst_83 = arith.constant 1.100000e+02 : f32
    %204 = vector.broadcast %cst_83 : f32 to vector<1x256xf32>
    %205 = arith.mulf %203, %204 : vector<1x256xf32>
    %c1_84 = arith.constant 1 : index
    %206 = memref.load %arg5[%c1_84] : memref<2xf32, #tpu.memory_space<smem>>
    %207 = vector.broadcast %206 : f32 to vector<1x256xf32>
    %208 = arith.addf %199, %207 : vector<1x256xf32>
    %209 = math.tanh %208 : vector<1x256xf32>
    %cst_85 = arith.constant 1.100000e+02 : f32
    %210 = vector.broadcast %cst_85 : f32 to vector<1x256xf32>
    %211 = arith.mulf %209, %210 : vector<1x256xf32>
    %cst_86 = arith.constant 1.600000e+01 : f32
    %212 = vector.broadcast %cst_86 : f32 to vector<1x256xf32>
    %213 = arith.addf %77, %212 : vector<1x256xf32>
    %cst_87 = arith.constant 8.620690e-03 : f32
    %214 = vector.broadcast %cst_87 : f32 to vector<1x256xf32>
    %215 = arith.mulf %213, %214 : vector<1x256xf32>
    %cst_88 = arith.constant 2.000000e-03 : f32
    %216 = vector.broadcast %cst_88 : f32 to vector<1x256xf32>
    %217 = arith.mulf %205, %216 : vector<1x256xf32>
    %218 = arith.addf %217, %215 : vector<1x256xf32>
    %cst_89 = arith.constant 5.000000e-03 : f32
    %219 = vector.broadcast %cst_89 : f32 to vector<1x256xf32>
    %220 = arith.mulf %211, %219 : vector<1x256xf32>
    %221 = arith.subf %215, %220 : vector<1x256xf32>
    %cst_90 = arith.constant 0.000000e+00 : f32
    %222 = vector.broadcast %cst_90 : f32 to vector<1x256xf32>
    %223 = arith.maximumf %221, %222 : vector<1x256xf32>
    %cst_91 = arith.constant 0.206896603 : f32
    %224 = vector.broadcast %cst_91 : f32 to vector<1x256xf32>
    %225 = arith.cmpf ogt, %218, %224 : vector<1x256xf32>
    %226 = arith.mulf %218, %218 : vector<1x256xf32>
    %227 = arith.mulf %226, %218 : vector<1x256xf32>
    %cst_92 = arith.constant 0.137931034 : f32
    %228 = vector.broadcast %cst_92 : f32 to vector<1x256xf32>
    %229 = arith.subf %218, %228 : vector<1x256xf32>
    %cst_93 = arith.constant 0.128419161 : f32
    %230 = vector.broadcast %cst_93 : f32 to vector<1x256xf32>
    %231 = arith.mulf %229, %230 : vector<1x256xf32>
    %232 = arith.select %225, %227, %231 : vector<1x256xi1>, vector<1x256xf32>
    %cst_94 = arith.constant 0.95046997 : f32
    %233 = vector.broadcast %cst_94 : f32 to vector<1x256xf32>
    %234 = arith.mulf %232, %233 : vector<1x256xf32>
    %cst_95 = arith.constant 0.206896603 : f32
    %235 = vector.broadcast %cst_95 : f32 to vector<1x256xf32>
    %236 = arith.cmpf ogt, %215, %235 : vector<1x256xf32>
    %237 = arith.mulf %215, %215 : vector<1x256xf32>
    %238 = arith.mulf %237, %215 : vector<1x256xf32>
    %cst_96 = arith.constant 0.137931034 : f32
    %239 = vector.broadcast %cst_96 : f32 to vector<1x256xf32>
    %240 = arith.subf %215, %239 : vector<1x256xf32>
    %cst_97 = arith.constant 0.128419161 : f32
    %241 = vector.broadcast %cst_97 : f32 to vector<1x256xf32>
    %242 = arith.mulf %240, %241 : vector<1x256xf32>
    %243 = arith.select %236, %238, %242 : vector<1x256xi1>, vector<1x256xf32>
    %cst_98 = arith.constant 0.206896603 : f32
    %244 = vector.broadcast %cst_98 : f32 to vector<1x256xf32>
    %245 = arith.cmpf ogt, %223, %244 : vector<1x256xf32>
    %246 = arith.mulf %223, %223 : vector<1x256xf32>
    %247 = arith.mulf %246, %223 : vector<1x256xf32>
    %cst_99 = arith.constant 0.137931034 : f32
    %248 = vector.broadcast %cst_99 : f32 to vector<1x256xf32>
    %249 = arith.subf %223, %248 : vector<1x256xf32>
    %cst_100 = arith.constant 0.128419161 : f32
    %250 = vector.broadcast %cst_100 : f32 to vector<1x256xf32>
    %251 = arith.mulf %249, %250 : vector<1x256xf32>
    %252 = arith.select %245, %247, %251 : vector<1x256xi1>, vector<1x256xf32>
    %cst_101 = arith.constant 1.088830e+00 : f32
    %253 = vector.broadcast %cst_101 : f32 to vector<1x256xf32>
    %254 = arith.mulf %252, %253 : vector<1x256xf32>
    %cst_102 = arith.constant 3.24048138 : f32
    %255 = vector.broadcast %cst_102 : f32 to vector<1x256xf32>
    %256 = arith.mulf %255, %234 : vector<1x256xf32>
    %cst_103 = arith.constant 1.53715158 : f32
    %257 = vector.broadcast %cst_103 : f32 to vector<1x256xf32>
    %258 = arith.mulf %257, %243 : vector<1x256xf32>
    %259 = arith.subf %256, %258 : vector<1x256xf32>
    %cst_104 = arith.constant 0.498536319 : f32
    %260 = vector.broadcast %cst_104 : f32 to vector<1x256xf32>
    %261 = arith.mulf %260, %254 : vector<1x256xf32>
    %262 = arith.subf %259, %261 : vector<1x256xf32>
    %cst_105 = arith.constant -0.96925497 : f32
    %263 = vector.broadcast %cst_105 : f32 to vector<1x256xf32>
    %264 = arith.mulf %263, %234 : vector<1x256xf32>
    %cst_106 = arith.constant 1.875990e+00 : f32
    %265 = vector.broadcast %cst_106 : f32 to vector<1x256xf32>
    %266 = arith.mulf %265, %243 : vector<1x256xf32>
    %267 = arith.addf %264, %266 : vector<1x256xf32>
    %cst_107 = arith.constant 0.0415559262 : f32
    %268 = vector.broadcast %cst_107 : f32 to vector<1x256xf32>
    %269 = arith.mulf %268, %254 : vector<1x256xf32>
    %270 = arith.addf %267, %269 : vector<1x256xf32>
    %cst_108 = arith.constant 0.0556466393 : f32
    %271 = vector.broadcast %cst_108 : f32 to vector<1x256xf32>
    %272 = arith.mulf %271, %234 : vector<1x256xf32>
    %cst_109 = arith.constant 0.204041332 : f32
    %273 = vector.broadcast %cst_109 : f32 to vector<1x256xf32>
    %274 = arith.mulf %273, %243 : vector<1x256xf32>
    %275 = arith.subf %272, %274 : vector<1x256xf32>
    %cst_110 = arith.constant 1.05731106 : f32
    %276 = vector.broadcast %cst_110 : f32 to vector<1x256xf32>
    %277 = arith.mulf %276, %254 : vector<1x256xf32>
    %278 = arith.addf %275, %277 : vector<1x256xf32>
    %cst_111 = arith.constant 0.000000e+00 : f32
    %cst_112 = arith.constant 1.000000e+00 : f32
    %279 = vector.broadcast %cst_111 : f32 to vector<1x256xf32>
    %280 = arith.maximumf %279, %262 : vector<1x256xf32>
    %281 = vector.broadcast %cst_112 : f32 to vector<1x256xf32>
    %282 = arith.minimumf %281, %280 : vector<1x256xf32>
    %cst_113 = arith.constant 0.000000e+00 : f32
    %cst_114 = arith.constant 1.000000e+00 : f32
    %283 = vector.broadcast %cst_113 : f32 to vector<1x256xf32>
    %284 = arith.maximumf %283, %270 : vector<1x256xf32>
    %285 = vector.broadcast %cst_114 : f32 to vector<1x256xf32>
    %286 = arith.minimumf %285, %284 : vector<1x256xf32>
    %cst_115 = arith.constant 0.000000e+00 : f32
    %cst_116 = arith.constant 1.000000e+00 : f32
    %287 = vector.broadcast %cst_115 : f32 to vector<1x256xf32>
    %288 = arith.maximumf %287, %278 : vector<1x256xf32>
    %289 = vector.broadcast %cst_116 : f32 to vector<1x256xf32>
    %290 = arith.minimumf %289, %288 : vector<1x256xf32>
    %cst_117 = arith.constant 3.130800e-03 : f32
    %291 = vector.broadcast %cst_117 : f32 to vector<1x256xf32>
    %292 = arith.cmpf ogt, %282, %291 : vector<1x256xf32>
    %cst_118 = arith.constant 9.99999993E-9 : f32
    %293 = vector.broadcast %cst_118 : f32 to vector<1x256xf32>
    %294 = arith.maximumf %282, %293 : vector<1x256xf32>
    %295 = math.log %294 : vector<1x256xf32>
    %cst_119 = arith.constant 0.416666657 : f32
    %296 = vector.broadcast %cst_119 : f32 to vector<1x256xf32>
    %297 = arith.mulf %295, %296 : vector<1x256xf32>
    %298 = math.exp %297 : vector<1x256xf32>
    %cst_120 = arith.constant 1.055000e+00 : f32
    %299 = vector.broadcast %cst_120 : f32 to vector<1x256xf32>
    %300 = arith.mulf %299, %298 : vector<1x256xf32>
    %cst_121 = arith.constant 5.500000e-02 : f32
    %301 = vector.broadcast %cst_121 : f32 to vector<1x256xf32>
    %302 = arith.subf %300, %301 : vector<1x256xf32>
    %cst_122 = arith.constant 1.292000e+01 : f32
    %303 = vector.broadcast %cst_122 : f32 to vector<1x256xf32>
    %304 = arith.mulf %303, %282 : vector<1x256xf32>
    %305 = arith.select %292, %302, %304 : vector<1x256xi1>, vector<1x256xf32>
    %cst_123 = arith.constant 0.000000e+00 : f32
    %cst_124 = arith.constant 1.000000e+00 : f32
    %306 = vector.broadcast %cst_123 : f32 to vector<1x256xf32>
    %307 = arith.maximumf %306, %305 : vector<1x256xf32>
    %308 = vector.broadcast %cst_124 : f32 to vector<1x256xf32>
    %309 = arith.minimumf %308, %307 : vector<1x256xf32>
    %c0_125 = arith.constant 0 : index
    %c0_126 = arith.constant 0 : index
    %c0_127 = arith.constant 0 : index
    %c0_128 = arith.constant 0 : index
    %310 = vector.load %arg7[%c0_125, %c0_126, %c0_127, %c0_128] : memref<1x3x1x256xf32, #tpu.memory_space<vmem>>, vector<1x1x1x256xf32>
    %311 = vector.shape_cast %310 : vector<1x1x1x256xf32> to vector<1x256xf32>
    %312 = vector.shape_cast %309 : vector<1x256xf32> to vector<1x1x1x256xf32>
    tpu.vector_store %arg7[%c0_125, %c0_126, %c0_127, %c0_128], %312 {strides = array<i32>} : memref<1x3x1x256xf32, #tpu.memory_space<vmem>>, vector<1x1x1x256xf32>,
    %cst_129 = arith.constant 3.130800e-03 : f32
    %313 = vector.broadcast %cst_129 : f32 to vector<1x256xf32>
    %314 = arith.cmpf ogt, %286, %313 : vector<1x256xf32>
    %cst_130 = arith.constant 9.99999993E-9 : f32
    %315 = vector.broadcast %cst_130 : f32 to vector<1x256xf32>
    %316 = arith.maximumf %286, %315 : vector<1x256xf32>
    %317 = math.log %316 : vector<1x256xf32>
    %cst_131 = arith.constant 0.416666657 : f32
    %318 = vector.broadcast %cst_131 : f32 to vector<1x256xf32>
    %319 = arith.mulf %317, %318 : vector<1x256xf32>
    %320 = math.exp %319 : vector<1x256xf32>
    %cst_132 = arith.constant 1.055000e+00 : f32
    %321 = vector.broadcast %cst_132 : f32 to vector<1x256xf32>
    %322 = arith.mulf %321, %320 : vector<1x256xf32>
    %cst_133 = arith.constant 5.500000e-02 : f32
    %323 = vector.broadcast %cst_133 : f32 to vector<1x256xf32>
    %324 = arith.subf %322, %323 : vector<1x256xf32>
    %cst_134 = arith.constant 1.292000e+01 : f32
    %325 = vector.broadcast %cst_134 : f32 to vector<1x256xf32>
    %326 = arith.mulf %325, %286 : vector<1x256xf32>
    %327 = arith.select %314, %324, %326 : vector<1x256xi1>, vector<1x256xf32>
    %cst_135 = arith.constant 0.000000e+00 : f32
    %cst_136 = arith.constant 1.000000e+00 : f32
    %328 = vector.broadcast %cst_135 : f32 to vector<1x256xf32>
    %329 = arith.maximumf %328, %327 : vector<1x256xf32>
    %330 = vector.broadcast %cst_136 : f32 to vector<1x256xf32>
    %331 = arith.minimumf %330, %329 : vector<1x256xf32>
    %c0_137 = arith.constant 0 : index
    %c1_138 = arith.constant 1 : index
    %c0_139 = arith.constant 0 : index
    %c0_140 = arith.constant 0 : index
    %332 = vector.load %arg7[%c0_137, %c1_138, %c0_139, %c0_140] : memref<1x3x1x256xf32, #tpu.memory_space<vmem>>, vector<1x1x1x256xf32>
    %333 = vector.shape_cast %332 : vector<1x1x1x256xf32> to vector<1x256xf32>
    %334 = vector.shape_cast %331 : vector<1x256xf32> to vector<1x1x1x256xf32>
    tpu.vector_store %arg7[%c0_137, %c1_138, %c0_139, %c0_140], %334 {strides = array<i32>} : memref<1x3x1x256xf32, #tpu.memory_space<vmem>>, vector<1x1x1x256xf32>,
    %cst_141 = arith.constant 3.130800e-03 : f32
    %335 = vector.broadcast %cst_141 : f32 to vector<1x256xf32>
    %336 = arith.cmpf ogt, %290, %335 : vector<1x256xf32>
    %cst_142 = arith.constant 9.99999993E-9 : f32
    %337 = vector.broadcast %cst_142 : f32 to vector<1x256xf32>
    %338 = arith.maximumf %290, %337 : vector<1x256xf32>
    %339 = math.log %338 : vector<1x256xf32>
    %cst_143 = arith.constant 0.416666657 : f32
    %340 = vector.broadcast %cst_143 : f32 to vector<1x256xf32>
    %341 = arith.mulf %339, %340 : vector<1x256xf32>
    %342 = math.exp %341 : vector<1x256xf32>
    %cst_144 = arith.constant 1.055000e+00 : f32
    %343 = vector.broadcast %cst_144 : f32 to vector<1x256xf32>
    %344 = arith.mulf %343, %342 : vector<1x256xf32>
    %cst_145 = arith.constant 5.500000e-02 : f32
    %345 = vector.broadcast %cst_145 : f32 to vector<1x256xf32>
    %346 = arith.subf %344, %345 : vector<1x256xf32>
    %cst_146 = arith.constant 1.292000e+01 : f32
    %347 = vector.broadcast %cst_146 : f32 to vector<1x256xf32>
    %348 = arith.mulf %347, %290 : vector<1x256xf32>
    %349 = arith.select %336, %346, %348 : vector<1x256xi1>, vector<1x256xf32>
    %cst_147 = arith.constant 0.000000e+00 : f32
    %cst_148 = arith.constant 1.000000e+00 : f32
    %350 = vector.broadcast %cst_147 : f32 to vector<1x256xf32>
    %351 = arith.maximumf %350, %349 : vector<1x256xf32>
    %352 = vector.broadcast %cst_148 : f32 to vector<1x256xf32>
    %353 = arith.minimumf %352, %351 : vector<1x256xf32>
    %c0_149 = arith.constant 0 : index
    %c2_150 = arith.constant 2 : index
    %c0_151 = arith.constant 0 : index
    %c0_152 = arith.constant 0 : index
    %354 = vector.load %arg7[%c0_149, %c2_150, %c0_151, %c0_152] : memref<1x3x1x256xf32, #tpu.memory_space<vmem>>, vector<1x1x1x256xf32>
    %355 = vector.shape_cast %354 : vector<1x1x1x256xf32> to vector<1x256xf32>
    %356 = vector.shape_cast %353 : vector<1x256xf32> to vector<1x1x1x256xf32>
    tpu.vector_store %arg7[%c0_149, %c2_150, %c0_151, %c0_152], %356 {strides = array<i32>} : memref<1x3x1x256xf32, #tpu.memory_space<vmem>>, vector<1x1x1x256xf32>,
    return
  }
  func.func @transform_0(%arg0: i32, %arg1: i32) -> i32 {
    %c0_i32 = arith.constant 0 : i32
    %c0_i32_0 = arith.constant 0 : i32
    return %c0_i32 : i32
  }
  func.func @transform_1(%arg0: i32, %arg1: i32) -> i32 {
    %c0_i32 = arith.constant 0 : i32
    %c0_i32_0 = arith.constant 0 : i32
    return %c0_i32 : i32
  }
  func.func @transform_2(%arg0: i32, %arg1: i32) -> (i32, i32) {
    %c0_i32 = arith.constant 0 : i32
    %c0_i32_0 = arith.constant 0 : i32
    %c0_i32_1 = arith.constant 0 : i32
    return %c0_i32, %c0_i32_0 : i32, i32
  }
  func.func @transform_3(%arg0: i32, %arg1: i32) -> i32 {
    %c0_i32 = arith.constant 0 : i32
    %c0_i32_0 = arith.constant 0 : i32
    return %c0_i32 : i32
  }
  func.func @transform_4(%arg0: i32, %arg1: i32) -> (i32, i32, i32, i32) {
    %c0_i32 = arith.constant 0 : i32
    %c0_i32_0 = arith.constant 0 : i32
    %c0_i32_1 = arith.constant 0 : i32
    return %arg0, %c0_i32, %arg1, %c0_i32_0 : i32, i32, i32, i32
  }
  func.func @transform_5(%arg0: i32, %arg1: i32) -> (i32, i32, i32, i32) {
    %c0_i32 = arith.constant 0 : i32
    %c0_i32_0 = arith.constant 0 : i32
    %c0_i32_1 = arith.constant 0 : i32
    return %arg0, %c0_i32, %arg1, %c0_i32_0 : i32, i32, i32, i32
  }
}

</mosaic_0001>

<llo_original>
// kernel: lab_wrapper_forward.1
$region0: #{lab_wrapper_forward.1}
  #allocation0 [shape = 'u32[]', space=smem, size = 0x4, offset = 0x4, fixed_abs, tag = 'smem constant byte address 0x4 - core index']
  #allocation1 [shape = 'u32[72,128]{1,0:T(1,128)}', space=vmem, size = 0x9000, scoped, tag = 'internal scratch']
  %s0 = inlined_call_operand.vmem [shape: f32[8], index: 0, kind: input, shape index: {}]
  %s1 = inlined_call_operand.vmem [shape: f32[8], index: 1, kind: input, shape index: {}]
  %s2 = inlined_call_operand.vmem [shape: f32[8,2], index: 2, kind: input, shape index: {}]
  %s3 = inlined_call_operand.vmem [shape: f32[2], index: 3, kind: input, shape index: {}]
  %s4 = inlined_call_operand.vmem [shape: f32[2,3,1,256], index: 4, kind: input, shape index: {}]
  %s5 = inlined_call_operand.vmem [shape: f32[2,3,1,256], index: 5, kind: output, shape index: {}]
  %s6 = sld [smem:[#allocation0]]
  $region69: #{lab_wrapper_forward.1} parent=0
    _
  %s8 = ssub.s32 1, %s6
  %s9 = scalar_select 0, %s8, %s6
  $region1: #{lab_wrapper_forward.1} parent=0
    #allocation2 [shape = 'u8[512]{0}', space=smem, size = 0x200, scoped, tag = 'input window, operand 0, single buffered']
    #allocation3 [shape = 's32[2]{0}', space=sflag, size = 0x8, scoped, tag = 'scoped memory for lab_wrapper_forward.1']
    #allocation4 [shape = 'u8[512]{0}', space=smem, size = 0x200, scoped, tag = 'input window, operand 1, single buffered']
    #allocation5 [shape = 's32[1]{0}', space=sflag, size = 0x4, scoped, tag = 'scoped memory for lab_wrapper_forward.1']
    #allocation6 [shape = 'u8[4096]{0}', space=smem, size = 0x1000, scoped, tag = 'input window, operand 2, single buffered']
    #allocation7 [shape = 'u8[512]{0}', space=smem, size = 0x200, scoped, tag = 'input window, operand 3, single buffered']
    #allocation8 [shape = 's32[1]{0}', space=sflag, size = 0x4, scoped, tag = 'scoped memory for lab_wrapper_forward.1']
    %10 = vsyncpa [#allocation3], 0
    %11 = vsyncpa [#allocation5], 0
    %12 = vsyncpa [#allocation8], 0
    loop: start=0, step=1, limit=4
    $region2: #{lab_wrapper_forward.1} parent=1 // loop_pre_header
      _
    $region3: #{lab_wrapper_forward.1} parent=1 // loop_header
      %s14 = sphi 0, %s18
      %p15 = scmp.ge.s32.totalorder %s14, 4
      %s21 = sphi 0, %s33
      %s22 = sphi 0, %s29
      %s23 = sphi 0, %s21
      %s24 = sphi 0, %s22
      %s25 = sphi 0, %s23
      %s26 = sphi 0, %s24
      %s34 = sphi 0, %s34
      %s36 = sphi 0, %s34
      %s37 = sphi 0, %s36
      %s51 = sphi 0, %s37
      %s55 = sphi 0, %s55
      %s57 = sphi 0, %s55
      %s58 = sphi 0, %s57
      %s72 = sphi 0, %s58
      %s76 = sphi 0, %s76
      %s78 = sphi 0, %s76
      %s79 = sphi 0, %s78
      %s93 = sphi 0, %s79
      %s97 = sphi 0, %s97
      %s99 = sphi 0, %s97
      %s100 = sphi 0, %s99
      %s114 = sphi 0, %s100
      %s122 = sphi 0, %s124
      %s125 = sphi 0, %s122
      %s126 = sphi 0, %s125
      %s142 = sphi 0, %s126
      %s150 = sphi 0, %s152
      %s153 = sphi 0, %s150
      %s154 = sphi 0, %s153
      %s170 = sphi 0, %s154
    $region4: #{lab_wrapper_forward.1} parent=1 // loop_header_branch
      %17 = sbr.rel (%p15) target = $region8
    $region5: #{lab_wrapper_forward.1} parent=1 // loop_body
      %s19 = ssub.s32 %s14, 1
      %s20 = ssub.s32 %s14, 2
      %s27 = sadd.s32 1, %s22
      %p28 = scmp.ge.s32.totalorder %s27, 1
      %s29 = scalar_select %p28, 0, %s27
      %s30 = sadd.s32 1, %s21
      %s31 = scalar_select %p28, %s30, %s21
      %p32 = scmp.ge.s32.totalorder %s31, 2
      %s33 = scalar_select %p32, 0, %s31
      %s35 = sadd.s32 %s34, 1
      %p38 = scmp.eq.s32.totalorder %s14, 1
      %p39 = scmp.ne.s32.totalorder %s34, %s36
      %p40 = scmp.eq.s32.totalorder %s14, 0
      %p41 = por %p39, %p40
      %p42 = scmp.ne.s32.totalorder %s34, %s36
      %p43 = scmp.eq.s32.totalorder %s19, 1
      %p44 = por %p42, %p43
      %p45 = scmp.ne.s32.totalorder %s36, %s37
      %p46 = scmp.eq.s32.totalorder %s19, 0
      %p47 = por %p45, %p46
      %p48 = scmp.ne.s32.totalorder %s36, %s37
      %p49 = scmp.eq.s32.totalorder %s20, 1
      %p50 = por %p48, %p49
      %p52 = scmp.ne.s32.totalorder %s37, %s51
      %p53 = scmp.eq.s32.totalorder %s20, 0
      %p54 = por %p52, %p53
      %s56 = sadd.s32 %s55, 1
      %p59 = scmp.eq.s32.totalorder %s14, 1
      %p60 = scmp.ne.s32.totalorder %s55, %s57
      %p61 = scmp.eq.s32.totalorder %s14, 0
      %p62 = por %p60, %p61
      %p63 = scmp.ne.s32.totalorder %s55, %s57
      %p64 = scmp.eq.s32.totalorder %s19, 1
      %p65 = por %p63, %p64
      %p66 = scmp.ne.s32.totalorder %s57, %s58
      %p67 = scmp.eq.s32.totalorder %s19, 0
      %p68 = por %p66, %p67
      %p69 = scmp.ne.s32.totalorder %s57, %s58
      %p70 = scmp.eq.s32.totalorder %s20, 1
      %p71 = por %p69, %p70
      %p73 = scmp.ne.s32.totalorder %s58, %s72
      %p74 = scmp.eq.s32.totalorder %s20, 0
      %p75 = por %p73, %p74
      %s77 = sadd.s32 %s76, 1
      %p80 = scmp.eq.s32.totalorder %s14, 1
      %p81 = scmp.ne.s32.totalorder %s76, %s78
      %p82 = scmp.eq.s32.totalorder %s14, 0
      %p83 = por %p81, %p82
      %p84 = scmp.ne.s32.totalorder %s76, %s78
      %p85 = scmp.eq.s32.totalorder %s19, 1
      %p86 = por %p84, %p85
      %p87 = scmp.ne.s32.totalorder %s78, %s79
      %p88 = scmp.eq.s32.totalorder %s19, 0
      %p89 = por %p87, %p88
      %p90 = scmp.ne.s32.totalorder %s78, %s79
      %p91 = scmp.eq.s32.totalorder %s20, 1
      %p92 = por %p90, %p91
      %p94 = scmp.ne.s32.totalorder %s79, %s93
      %p95 = scmp.eq.s32.totalorder %s20, 0
      %p96 = por %p94, %p95
      %s98 = sadd.s32 %s97, 1
      %p101 = scmp.eq.s32.totalorder %s14, 1
      %p102 = scmp.ne.s32.totalorder %s97, %s99
      %p103 = scmp.eq.s32.totalorder %s14, 0
      %p104 = por %p102, %p103
      %p105 = scmp.ne.s32.totalorder %s97, %s99
      %p106 = scmp.eq.s32.totalorder %s19, 1
      %p107 = por %p105, %p106
      %p108 = scmp.ne.s32.totalorder %s99, %s100
      %p109 = scmp.eq.s32.totalorder %s19, 0
      %p110 = por %p108, %p109
      %p111 = scmp.ne.s32.totalorder %s99, %s100
      %p112 = scmp.eq.s32.totalorder %s20, 1
      %p113 = por %p111, %p112
      %p115 = scmp.ne.s32.totalorder %s100, %s114
      %p116 = scmp.eq.s32.totalorder %s20, 0
      %p117 = por %p115, %p116
      %s118 = ssub.s32 %s21, %s33
      %s119 = ssub.s32 %s22, %s29
      %s120 = sor.u32 %s118, %s119
      %p121 = scmp.eq.s32.totalorder %s120, 0
      %s123 = sadd.s32 %s122, 1
      %s124 = scalar_select %p121, %s122, %s123
      %p127 = pneg %p121
      %p128 = scmp.eq.s32.totalorder %s14, 1
      %p129 = por %p127, %p128
      %p130 = scmp.ne.s32.totalorder %s122, %s125
      %p131 = scmp.eq.s32.totalorder %s14, 0
      %p132 = por %p130, %p131
      %p133 = scmp.ne.s32.totalorder %s122, %s125
      %p134 = scmp.eq.s32.totalorder %s19, 1
      %p135 = por %p133, %p134
      %p136 = scmp.ne.s32.totalorder %s125, %s126
      %p137 = scmp.eq.s32.totalorder %s19, 0
      %p138 = por %p136, %p137
      %p139 = scmp.ne.s32.totalorder %s125, %s126
      %p140 = scmp.eq.s32.totalorder %s20, 1
      %p141 = por %p139, %p140
      %p143 = scmp.ne.s32.totalorder %s126, %s142
      %p144 = scmp.eq.s32.totalorder %s20, 0
      %p145 = por %p143, %p144
      %s146 = ssub.s32 %s21, %s33
      %s147 = ssub.s32 %s22, %s29
      %s148 = sor.u32 %s146, %s147
      %p149 = scmp.eq.s32.totalorder %s148, 0
      %s151 = sadd.s32 %s150, 1
      %s152 = scalar_select %p149, %s150, %s151
      %p155 = pneg %p149
      %p156 = scmp.eq.s32.totalorder %s14, 1
      %p157 = por %p155, %p156
      %p158 = scmp.ne.s32.totalorder %s150, %s153
      %p159 = scmp.eq.s32.totalorder %s14, 0
      %p160 = por %p158, %p159
      %p161 = scmp.ne.s32.totalorder %s150, %s153
      %p162 = scmp.eq.s32.totalorder %s19, 1
      %p163 = por %p161, %p162
      %p164 = scmp.ne.s32.totalorder %s153, %s154
      %p165 = scmp.eq.s32.totalorder %s19, 0
      %p166 = por %p164, %p165
      %p167 = scmp.ne.s32.totalorder %s153, %s154
      %p168 = scmp.eq.s32.totalorder %s20, 1
      %p169 = por %p167, %p168
      %p171 = scmp.ne.s32.totalorder %s154, %s170
      %p172 = scmp.eq.s32.totalorder %s20, 0
      %p173 = por %p171, %p172
      %p174 = scmp.le.s32.totalorder 1, %s14
      %p175 = scmp.lt.s32.totalorder %s14, 3
      %p176 = pnand %p174, %p175
      %p177 = pneg %p176
      // Predicated region
      $region9: #{lab_wrapper_forward.1} parent=5 // pred_check
        _
      $region10: #{lab_wrapper_forward.1} parent=5 // pred_check_branch
        %179 = sbr.rel (%p176) target = $region12
      $region11: #{lab_wrapper_forward.1} parent=5 // pred_region
        %s180 = ssub.s32 %s14, 1
        // Predicated region
        $region13: #{lab_wrapper_forward.1} parent=11 // pred_check
          %p181 = pneg %p47
        $region14: #{lab_wrapper_forward.1} parent=11 // pred_check_branch
          %183 = sbr.rel (%p181) target = $region16
        $region15: #{lab_wrapper_forward.1} parent=11 // pred_region
          %185 = vsyncadd [#allocation3], 0
          %s187 = sshll.u32 %s0, 4
          %s188 = int_to_ptr.vmem [resolvable:$true] %s187
          %190 = dma.vmem_to_smem %s188, 16, [#allocation2], [#allocation3]
        $region16: #{lab_wrapper_forward.1} parent=11 // pred_fallthru
          _
        // Predicated region
        $region17: #{lab_wrapper_forward.1} parent=11 // pred_check
          %p191 = pneg %p68
        $region18: #{lab_wrapper_forward.1} parent=11 // pred_check_branch
          %193 = sbr.rel (%p191) target = $region20
        $region19: #{lab_wrapper_forward.1} parent=11 // pred_region
          %195 = vsyncadd [#allocation5], 0
          %s197 = sshll.u32 %s1, 4
          %s198 = int_to_ptr.vmem [resolvable:$true] %s197
          %200 = dma.vmem_to_smem %s198, 16, [#allocation4], [#allocation5]
        $region20: #{lab_wrapper_forward.1} parent=11 // pred_fallthru
          _
        // Predicated region
        $region21: #{lab_wrapper_forward.1} parent=11 // pred_check
          %p201 = pneg %p89
        $region22: #{lab_wrapper_forward.1} parent=11 // pred_check_branch
          %203 = sbr.rel (%p201) target = $region24
        $region23: #{lab_wrapper_forward.1} parent=11 // pred_region
          %205 = vsyncadd [#allocation5], 0
          %s207 = sshll.u32 %s2, 4
          %s208 = int_to_ptr.vmem [resolvable:$true] %s207
          %210 = dma.vmem_to_smem %s208, 128, [#allocation6], [#allocation5]
        $region24: #{lab_wrapper_forward.1} parent=11 // pred_fallthru
          _
        // Predicated region
        $region25: #{lab_wrapper_forward.1} parent=11 // pred_check
          %p211 = pneg %p110
        $region26: #{lab_wrapper_forward.1} parent=11 // pred_check_branch
          %213 = sbr.rel (%p211) target = $region28
        $region27: #{lab_wrapper_forward.1} parent=11 // pred_region
          %215 = vsyncadd [#allocation8], 0
          %s217 = sshll.u32 %s3, 4
          %s218 = int_to_ptr.vmem [resolvable:$true] %s217
          %220 = dma.vmem_to_smem %s218, 16, [#allocation7], [#allocation8]
        $region28: #{lab_wrapper_forward.1} parent=11 // pred_fallthru
          _
      $region12: #{lab_wrapper_forward.1} parent=5 // pred_fallthru
        _
      %p221 = scmp.lt.s32.totalorder %s14, 2
      // Predicated region
      $region29: #{lab_wrapper_forward.1} parent=5 // pred_check
        %p222 = pneg %p221
      $region30: #{lab_wrapper_forward.1} parent=5 // pred_check_branch
        %224 = sbr.rel (%p222) target = $region32
      $region31: #{lab_wrapper_forward.1} parent=5 // pred_region
        // Predicated region
        $region33: #{lab_wrapper_forward.1} parent=31 // pred_check
          %p225 = pneg %p132
        $region34: #{lab_wrapper_forward.1} parent=31 // pred_check_branch
          %227 = sbr.rel (%p225) target = $region36
        $region35: #{lab_wrapper_forward.1} parent=31 // pred_region
          %p228 = scmp.lt.s32.totalorder %s21, 1
          %s229 = scalar_select %p228, %s21, 1
          %p230 = scmp.lt.s32.totalorder %s22, 0
          %s231 = scalar_select %p230, %s22, 0
          %s232 = smul.addr %s231, 2
          %s233 = smul.addr %s229, 6
          %s234 = sadd.s32 %s232, %s233
          %s235 = scalar_lea.vmem %s4, %s234
        $region36: #{lab_wrapper_forward.1} parent=31 // pred_fallthru
          _
      $region32: #{lab_wrapper_forward.1} parent=5 // pred_fallthru
        _
      %p236 = scmp.le.s32.totalorder 1, %s14
      %p237 = scmp.lt.s32.totalorder %s14, 3
      %p238 = pnand %p236, %p237
      %p239 = pneg %p238
      // Predicated region
      $region37: #{lab_wrapper_forward.1} parent=5 // pred_check
        _
      $region38: #{lab_wrapper_forward.1} parent=5 // pred_check_branch
        %241 = sbr.rel (%p238) target = $region40
      $region39: #{lab_wrapper_forward.1} parent=5 // pred_region
        %s242 = ssub.s32 %s14, 1
        // Predicated region
        $region41: #{lab_wrapper_forward.1} parent=39 // pred_check
          %p243 = pneg %p47
        $region42: #{lab_wrapper_forward.1} parent=39 // pred_check_branch
          %245 = sbr.rel (%p243) target = $region44
        $region43: #{lab_wrapper_forward.1} parent=39 // pred_region
          %247 = dma.done [#allocation3], 16
        $region44: #{lab_wrapper_forward.1} parent=39 // pred_fallthru
          _
        // Predicated region
        $region45: #{lab_wrapper_forward.1} parent=39 // pred_check
          %p248 = pneg %p68
        $region46: #{lab_wrapper_forward.1} parent=39 // pred_check_branch
          %250 = sbr.rel (%p248) target = $region48
        $region47: #{lab_wrapper_forward.1} parent=39 // pred_region
          %252 = dma.done [#allocation5], 16
        $region48: #{lab_wrapper_forward.1} parent=39 // pred_fallthru
          _
        // Predicated region
        $region49: #{lab_wrapper_forward.1} parent=39 // pred_check
          %p253 = pneg %p89
        $region50: #{lab_wrapper_forward.1} parent=39 // pred_check_branch
          %255 = sbr.rel (%p253) target = $region52
        $region51: #{lab_wrapper_forward.1} parent=39 // pred_region
          %257 = dma.done [#allocation5], 128
        $region52: #{lab_wrapper_forward.1} parent=39 // pred_fallthru
          _
        // Predicated region
        $region53: #{lab_wrapper_forward.1} parent=39 // pred_check
          %p258 = pneg %p110
        $region54: #{lab_wrapper_forward.1} parent=39 // pred_check_branch
          %260 = sbr.rel (%p258) target = $region56
        $region55: #{lab_wrapper_forward.1} parent=39 // pred_region
          %262 = dma.done [#allocation8], 16
        $region56: #{lab_wrapper_forward.1} parent=39 // pred_fallthru
          _
        %263 = sfence
        %p264 = pneg %p47
        %p265 = pneg %p44
        %p266 = pneg %p68
        %p267 = pneg %p65
        %p268 = pneg %p89
        %p269 = pneg %p86
        %p270 = pneg %p110
        %p271 = pneg %p107
        %p272 = scmp.lt.s32.totalorder %s23, 1
        %s273 = scalar_select %p272, %s23, 1
        %p274 = scmp.lt.s32.totalorder %s24, 0
        %s275 = scalar_select %p274, %s24, 0
        %s276 = smul.addr %s275, 2
        %s277 = smul.addr %s273, 6
        %s278 = sadd.s32 %s276, %s277
        %s279 = scalar_lea.vmem %s4, %s278
        %p280 = pneg %p138
        %p281 = pneg %p135
        %p282 = pneg %p166
        %p283 = pneg %p163
        %p284 = scmp.lt.s32.totalorder %s23, 1
        %s285 = scalar_select %p284, %s23, 1
        %p286 = scmp.lt.s32.totalorder %s24, 0
        %s287 = scalar_select %p286, %s24, 0
        %s288 = smul.addr %s287, 2
        %s289 = smul.addr %s285, 6
        %s290 = sadd.s32 %s288, %s289
        %s291 = scalar_lea.vmem %s5, %s290
        %p292 = scmp.lt.s32.totalorder %s23, 1
        %s293 = scalar_select %p292, %s23, 1
        %p294 = scmp.lt.s32.totalorder %s24, 0
        %s295 = scalar_select %p294, %s24, 0
        %s296 = smul.addr %s295, 2
        %s297 = smul.addr %s293, 6
        %s298 = sadd.s32 %s296, %s297
        %s299 = scalar_lea.vmem %s4, %s298
        %p300 = scmp.lt.s32.totalorder %s23, 1
        %s301 = scalar_select %p300, %s23, 1
        %p302 = scmp.lt.s32.totalorder %s24, 0
        %s303 = scalar_select %p302, %s24, 0
        %s304 = smul.addr %s303, 2
        %s305 = smul.addr %s301, 6
        %s306 = sadd.s32 %s304, %s305
        %s307 = scalar_lea.vmem %s5, %s306
        %v308 = vld [vmem:[%s299] sm:$0x3]
        %s309 = scalar_lea.vmem %s299, 2
        %v310 = vld [vmem:[%s309] sm:$0x3]
        %s311 = scalar_lea.vmem %s299, 4
        %v312 = vld [vmem:[%s311] sm:$0x3]
        %vm313 = vcmp.gt.f32.partialorder %v308, 0.04045
        %v314 = vadd.f32 %v308, 0.055
        %v315 = vmul.f32 %v314, 0.9478673
        %v316 = vmax.f32 %v315, 1e-08
        %v317 = vlog2.pop %v316
        %v318 = vmul.f32 %v317, 0.6931472
        %v319 = vmul.f32 %v318, 2.4
        %v320 = vmul.f32 %v319, 1.442695
        %v321 = vpow.pop %v320
        %v322 = vmul.f32 %v308, 0.07739938
        %v323 = vsel %vm313, %v321, %v322
        %vm324 = vcmp.gt.f32.partialorder %v310, 0.04045
        %v325 = vadd.f32 %v310, 0.055
        %v326 = vmul.f32 %v325, 0.9478673
        %v327 = vmax.f32 %v326, 1e-08
        %v328 = vlog2.pop %v327
        %v329 = vmul.f32 %v328, 0.6931472
        %v330 = vmul.f32 %v329, 2.4
        %v331 = vmul.f32 %v330, 1.442695
        %v332 = vpow.pop %v331
        %v333 = vmul.f32 %v310, 0.07739938
        %v334 = vsel %vm324, %v332, %v333
        %vm335 = vcmp.gt.f32.partialorder %v312, 0.04045
        %v336 = vadd.f32 %v312, 0.055
        %v337 = vmul.f32 %v336, 0.9478673
        %v338 = vmax.f32 %v337, 1e-08
        %v339 = vlog2.pop %v338
        %v340 = vmul.f32 %v339, 0.6931472
        %v341 = vmul.f32 %v340, 2.4
        %v342 = vmul.f32 %v341, 1.442695
        %v343 = vpow.pop %v342
        %v344 = vmul.f32 %v312, 0.07739938
        %v345 = vsel %vm335, %v343, %v344
        %v346 = vmul.f32 %v323, 0.212671
        %v347 = vmul.f32 %v334, 0.71516
        %v348 = vadd.f32 %v346, %v347
        %v349 = vmul.f32 %v345, 0.072169
        %v350 = vadd.f32 %v348, %v349
        %vm351 = vcmp.gt.f32.partialorder %v350, 0.008856
        %v352 = vmax.f32 %v350, 0.008856
        %v353 = vmax.f32 %v352, 1e-08
        %v354 = vlog2.pop %v353
        %v355 = vmul.f32 %v354, 0.6931472
        %v356 = vmul.f32 %v355, 0.33333334
        %v357 = vmul.f32 %v356, 1.442695
        %v358 = vpow.pop %v357
        %v359 = vmul.f32 %v350, 7.787
        %v360 = vadd.f32 %v359, 0.13793103
        %v361 = vsel %vm351, %v358, %v360
        %v362 = vmul.f32 %v361, 116.0
        %v363 = vsub.f32 %v362, 16.0
        %v364 = vmul.f32 %v363, 0.02
        %v365 = vsub.f32 %v364, 1.0
        %s366 = sld [smem:[#allocation2]]
        %s367 = sld [smem:[#allocation2 + $0x1]]
        %s368 = sld [smem:[#allocation2 + $0x2]]
        %s369 = sld [smem:[#allocation2 + $0x3]]
        %s370 = sld [smem:[#allocation2 + $0x4]]
        %s371 = sld [smem:[#allocation2 + $0x5]]
        %s372 = sld [smem:[#allocation2 + $0x6]]
        %s373 = sld [smem:[#allocation2 + $0x7]]
        %s374 = sld [smem:[#allocation4]]
        %s375 = sld [smem:[#allocation4 + $0x1]]
        %s376 = sld [smem:[#allocation4 + $0x2]]
        %s377 = sld [smem:[#allocation4 + $0x3]]
        %s378 = sld [smem:[#allocation4 + $0x4]]
        %s379 = sld [smem:[#allocation4 + $0x5]]
        %s380 = sld [smem:[#allocation4 + $0x6]]
        %s381 = sld [smem:[#allocation4 + $0x7]]
        %s382 = sld [smem:[#allocation6]]
        %s383 = sld [smem:[#allocation6 + $0x80]]
        %s384 = sld [smem:[#allocation6 + $0x100]]
        %s385 = sld [smem:[#allocation6 + $0x180]]
        %s386 = sld [smem:[#allocation6 + $0x200]]
        %s387 = sld [smem:[#allocation6 + $0x280]]
        %s388 = sld [smem:[#allocation6 + $0x300]]
        %s389 = sld [smem:[#allocation6 + $0x380]]
        %s390 = sld [smem:[#allocation6 + $0x1]]
        %s391 = sld [smem:[#allocation6 + $0x81]]
        %s392 = sld [smem:[#allocation6 + $0x101]]
        %s393 = sld [smem:[#allocation6 + $0x181]]
        %s394 = sld [smem:[#allocation6 + $0x201]]
        %s395 = sld [smem:[#allocation6 + $0x281]]
        %s396 = sld [smem:[#allocation6 + $0x301]]
        %s397 = sld [smem:[#allocation6 + $0x381]]
        %v398 = vstv %s366
        %v399 = vmul.f32 %v365, %v398
        %v400 = vstv %s374
        %v401 = vadd.f32 %v399, %v400
        %v402 = vtanh.pop %v401
        %v403 = vstv %s382
        %v404 = vmul.f32 %v402, %v403
        %v405 = vstv %s390
        %v406 = vmul.f32 %v402, %v405
        %v407 = vstv %s367
        %v408 = vmul.f32 %v365, %v407
        %v409 = vstv %s375
        %v410 = vadd.f32 %v408, %v409
        %v411 = vtanh.pop %v410
        %v412 = vstv %s383
        %v413 = vmul.f32 %v411, %v412
        %v414 = vadd.f32 %v404, %v413
        %v415 = vstv %s391
        %v416 = vmul.f32 %v411, %v415
        %v417 = vadd.f32 %v406, %v416
        %v418 = vstv %s368
        %v419 = vmul.f32 %v365, %v418
        %v420 = vstv %s376
        %v421 = vadd.f32 %v419, %v420
        %v422 = vtanh.pop %v421
        %v423 = vstv %s384
        %v424 = vmul.f32 %v422, %v423
        %v425 = vadd.f32 %v414, %v424
        %v426 = vstv %s392
        %v427 = vmul.f32 %v422, %v426
        %v428 = vadd.f32 %v417, %v427
        %v429 = vstv %s369
        %v430 = vmul.f32 %v365, %v429
        %v431 = vstv %s377
        %v432 = vadd.f32 %v430, %v431
        %v433 = vtanh.pop %v432
        %v434 = vstv %s385
        %v435 = vmul.f32 %v433, %v434
        %v436 = vadd.f32 %v425, %v435
        %v437 = vstv %s393
        %v438 = vmul.f32 %v433, %v437
        %v439 = vadd.f32 %v428, %v438
        %v440 = vstv %s370
        %v441 = vmul.f32 %v365, %v440
        %v442 = vstv %s378
        %v443 = vadd.f32 %v441, %v442
        %v444 = vtanh.pop %v443
        %v445 = vstv %s386
        %v446 = vmul.f32 %v444, %v445
        %v447 = vadd.f32 %v436, %v446
        %v448 = vstv %s394
        %v449 = vmul.f32 %v444, %v448
        %v450 = vadd.f32 %v439, %v449
        %v451 = vstv %s371
        %v452 = vmul.f32 %v365, %v451
        %v453 = vstv %s379
        %v454 = vadd.f32 %v452, %v453
        %v455 = vtanh.pop %v454
        %v456 = vstv %s387
        %v457 = vmul.f32 %v455, %v456
        %v458 = vadd.f32 %v447, %v457
        %v459 = vstv %s395
        %v460 = vmul.f32 %v455, %v459
        %v461 = vadd.f32 %v450, %v460
        %v462 = vstv %s372
        %v463 = vmul.f32 %v365, %v462
        %v464 = vstv %s380
        %v465 = vadd.f32 %v463, %v464
        %v466 = vtanh.pop %v465
        %v467 = vstv %s388
        %v468 = vmul.f32 %v466, %v467
        %v469 = vadd.f32 %v458, %v468
        %v470 = vstv %s396
        %v471 = vmul.f32 %v466, %v470
        %v472 = vadd.f32 %v461, %v471
        %v473 = vstv %s373
        %v474 = vmul.f32 %v365, %v473
        %v475 = vstv %s381
        %v476 = vadd.f32 %v474, %v475
        %v477 = vtanh.pop %v476
        %v478 = vstv %s389
        %v479 = vmul.f32 %v477, %v478
        %v480 = vadd.f32 %v469, %v479
        %v481 = vstv %s397
        %v482 = vmul.f32 %v477, %v481
        %v483 = vadd.f32 %v472, %v482
        %s484 = sld [smem:[#allocation7]]
        %v485 = vstv %s484
        %v486 = vadd.f32 %v480, %v485
        %v487 = vtanh.pop %v486
        %v488 = vmul.f32 %v487, 110.0
        %s489 = sld [smem:[#allocation7 + $0x1]]
        %v490 = vstv %s489
        %v491 = vadd.f32 %v483, %v490
        %v492 = vtanh.pop %v491
        %v493 = vmul.f32 %v492, 110.0
        %v494 = vadd.f32 %v363, 16.0
        %v495 = vmul.f32 %v494, 0.00862069
        %v496 = vmul.f32 %v488, 0.002
        %v497 = vadd.f32 %v496, %v495
        %v498 = vmul.f32 %v493, 0.005
        %v499 = vsub.f32 %v495, %v498
        %v500 = vmax.f32 %v499, 0.0
        %vm501 = vcmp.gt.f32.partialorder %v497, 0.2068966
        %v502 = vmul.f32 %v497, %v497
        %v503 = vmul.f32 %v502, %v497
        %v504 = vsub.f32 %v497, 0.13793103
        %v505 = vmul.f32 %v504, 0.12841916
        %v506 = vsel %vm501, %v503, %v505
        %v507 = vmul.f32 %v506, 0.95047
        %vm508 = vcmp.gt.f32.partialorder %v495, 0.2068966
        %v509 = vmul.f32 %v495, %v495
        %v510 = vmul.f32 %v509, %v495
        %v511 = vsub.f32 %v495, 0.13793103
        %v512 = vmul.f32 %v511, 0.12841916
        %v513 = vsel %vm508, %v510, %v512
        %vm514 = vcmp.gt.f32.partialorder %v500, 0.2068966
        %v515 = vmul.f32 %v500, %v500
        %v516 = vmul.f32 %v515, %v500
        %v517 = vsub.f32 %v500, 0.13793103
        %v518 = vmul.f32 %v517, 0.12841916
        %v519 = vsel %vm514, %v516, %v518
        %v520 = vmul.f32 %v519, 1.08883
        %v521 = vmul.f32 %v507, 3.2404814
        %v522 = vmul.f32 %v513, 1.5371516
        %v523 = vsub.f32 %v521, %v522
        %v524 = vmul.f32 %v520, 0.49853632
        %v525 = vsub.f32 %v523, %v524
        %v526 = vmul.f32 %v507, -0.969255
        %v527 = vmul.f32 %v513, 1.87599
        %v528 = vadd.f32 %v526, %v527
        %v529 = vmul.f32 %v520, 0.041555926
        %v530 = vadd.f32 %v528, %v529
        %v531 = vmul.f32 %v507, 0.05564664
        %v532 = vmul.f32 %v513, 0.20404133
        %v533 = vsub.f32 %v531, %v532
        %v534 = vmul.f32 %v520, 1.057311
        %v535 = vadd.f32 %v533, %v534
        %v536 = vmax.f32 %v525, 0.0
        %v537 = vmin.f32 %v536, 1.0
        %v538 = vmax.f32 %v530, 0.0
        %v539 = vmin.f32 %v538, 1.0
        %v540 = vmax.f32 %v535, 0.0
        %v541 = vmin.f32 %v540, 1.0
        %vm542 = vcmp.gt.f32.partialorder %v537, 0.0031308
        %v543 = vmax.f32 %v537, 1e-08
        %v544 = vlog2.pop %v543
        %v545 = vmul.f32 %v544, 0.6931472
        %v546 = vmul.f32 %v545, 0.41666666
        %v547 = vmul.f32 %v546, 1.442695
        %v548 = vpow.pop %v547
        %v549 = vmul.f32 %v548, 1.055
        %v550 = vsub.f32 %v549, 0.055
        %v551 = vmul.f32 %v537, 12.92
        %v552 = vsel %vm542, %v550, %v551
        %v553 = vmax.f32 %v552, 0.0
        %v554 = vmin.f32 %v553, 1.0
        %v555 = vlaneseq
        %vm556 = vcmp.ge.s32.totalorder %v555, 0
        %vm557 = vcmp.lt.s32.totalorder %v555, 256
        %vm558 = vmand %vm556, %vm557
        %559 = vst.msk [vmem:[%s307] sm:$0x3] %vm558, %v554
        %vm560 = vcmp.gt.f32.partialorder %v539, 0.0031308
        %v561 = vmax.f32 %v539, 1e-08
        %v562 = vlog2.pop %v561
        %v563 = vmul.f32 %v562, 0.6931472
        %v564 = vmul.f32 %v563, 0.41666666
        %v565 = vmul.f32 %v564, 1.442695
        %v566 = vpow.pop %v565
        %v567 = vmul.f32 %v566, 1.055
        %v568 = vsub.f32 %v567, 0.055
        %v569 = vmul.f32 %v539, 12.92
        %v570 = vsel %vm560, %v568, %v569
        %v571 = vmax.f32 %v570, 0.0
        %v572 = vmin.f32 %v571, 1.0
        %s573 = scalar_lea.vmem %s307, 2
        %574 = vst.msk [vmem:[%s573] sm:$0x3] %vm558, %v572
        %vm575 = vcmp.gt.f32.partialorder %v541, 0.0031308
        %v576 = vmax.f32 %v541, 1e-08
        %v577 = vlog2.pop %v576
        %v578 = vmul.f32 %v577, 0.6931472
        %v579 = vmul.f32 %v578, 0.41666666
        %v580 = vmul.f32 %v579, 1.442695
        %v581 = vpow.pop %v580
        %v582 = vmul.f32 %v581, 1.055
        %v583 = vsub.f32 %v582, 0.055
        %v584 = vmul.f32 %v541, 12.92
        %v585 = vsel %vm575, %v583, %v584
        %v586 = vmax.f32 %v585, 0.0
        %v587 = vmin.f32 %v586, 1.0
        %s588 = scalar_lea.vmem %s307, 4
        %589 = vst.msk [vmem:[%s588] sm:$0x3] %vm558, %v587
        %p590 = scmp.lt.s32.totalorder %s23, 1
        %s591 = scalar_select %p590, %s23, 1
        %p592 = scmp.lt.s32.totalorder %s24, 0
        %s593 = scalar_select %p592, %s24, 0
        %s594 = smul.addr %s593, 2
        %s595 = smul.addr %s591, 6
        %s596 = sadd.s32 %s594, %s595
        %s597 = scalar_lea.vmem %s5, %s596
        // Predicated region
        $region57: #{lab_wrapper_forward.1} parent=39 // pred_check
          %p598 = pneg %p163
        $region58: #{lab_wrapper_forward.1} parent=39 // pred_check_branch
          %600 = sbr.rel (%p598) target = $region60
        $region59: #{lab_wrapper_forward.1} parent=39 // pred_region
          _
        $region60: #{lab_wrapper_forward.1} parent=39 // pred_fallthru
          _
      $region40: #{lab_wrapper_forward.1} parent=5 // pred_fallthru
        _
      %p601 = scmp.le.s32.totalorder 2, %s14
      // Predicated region
      $region61: #{lab_wrapper_forward.1} parent=5 // pred_check
        %p602 = pneg %p601
      $region62: #{lab_wrapper_forward.1} parent=5 // pred_check_branch
        %604 = sbr.rel (%p602) target = $region64
      $region63: #{lab_wrapper_forward.1} parent=5 // pred_region
        %s605 = ssub.s32 %s14, 2
        // Predicated region
        $region65: #{lab_wrapper_forward.1} parent=63 // pred_check
          %p606 = pneg %p169
        $region66: #{lab_wrapper_forward.1} parent=63 // pred_check_branch
          %608 = sbr.rel (%p606) target = $region68
        $region67: #{lab_wrapper_forward.1} parent=63 // pred_region
          %p609 = scmp.lt.s32.totalorder %s25, 1
          %s610 = scalar_select %p609, %s25, 1
          %p611 = scmp.lt.s32.totalorder %s26, 0
          %s612 = scalar_select %p611, %s26, 0
          %s613 = smul.addr %s612, 2
          %s614 = smul.addr %s610, 6
          %s615 = sadd.s32 %s613, %s614
          %s616 = scalar_lea.vmem %s5, %s615
        $region68: #{lab_wrapper_forward.1} parent=63 // pred_fallthru
          _
      $region64: #{lab_wrapper_forward.1} parent=5 // pred_fallthru
        _
    $region6: #{lab_wrapper_forward.1} parent=1 // loop_footer
      %s18 = sadd.s32 1, %s14
    $region7: #{lab_wrapper_forward.1} parent=1 // loop_footer_branch
      %13 = sbr.rel target = $region3
    $region8: #{lab_wrapper_forward.1} parent=1 // loop_exit
      _
    %617 = vsyncpa [#allocation3], 1
    %s618 = scalar_lea.sflag [#allocation3], 1
    %619 = vsyncpa %s618, 1
    %620 = vsyncpa [#allocation5], 1
    %621 = vsyncpa [#allocation8], 1

</llo_original>
